<compile_context>
chip_gen: v7x
topology: tpu7x:2x2x1
jax: 0.10.0
libtpu: 0.0.40
codegen_flags: <defaults>
</compile_context>

<pallas_src>
import functools

import jax
import jax.numpy as jnp
import numpy as np
from jax.experimental import pallas as pl
from jax.experimental.pallas import tpu as pltpu

# ---------------------------------------------------------------------------
# TrajParamIndex (the reference imports it from elsewhere; assumed layout)
# ---------------------------------------------------------------------------
TRAJ_X = 0
TRAJ_Y = 1
TRAJ_Z = 2
TRAJ_HAS_OBJECT = 8
TRAJ_END_OF_INDEX = 12

_ALPHA = 0.25  # focal alpha (gamma == 2.0, applied as an explicit square)


def _round_up(x: int, m: int) -> int:
    return ((x + m - 1) // m) * m


# ---------------------------------------------------------------------------
# Pallas kernel: matching cost matrix for one (layer, batch) grid step
# ---------------------------------------------------------------------------
def _cost_matrix_kernel(pred_ref, gt_ref, cost_ref):
    # pred_ref: (N_pad, 4)   channels = [X, Y, Z, HAS_OBJECT], N in sublanes
    # gt_ref:   (4, M_pad)   channel-major, M in lanes
    # cost_ref: (N_pad, M_pad)

    # --- L1 center distance over X, Y, Z; each term is a single
    #     (N,1)x(1,M_pad) broadcast; everything stays lane-dense.
    dist = jnp.abs(pred_ref[:, 0:1] - gt_ref[0:1, :])
    for k in (1, 2):
        dist = dist + jnp.abs(pred_ref[:, k:k + 1] - gt_ref[k:k + 1, :])
    center_loss = 1.0 - jnp.exp(-dist * (1.0 / 30.0))

    # --- focal-loss style classification cost on HAS_OBJECT
    pred_obj = pred_ref[:, 3:4]              # (N, 1) logits
    gt_obj = gt_ref[3:4, :]                  # (1, M_pad) labels in {0, 1}
    prob = jax.nn.sigmoid(pred_obj)          # transcendentals only on (N, 1)
    one_m_prob = 1.0 - prob
    # gamma == 2.0 -> explicit squares (VPU) instead of pow (EUP log/exp chain)
    neg_cost = (1.0 - _ALPHA) * (prob * prob) * -jnp.log(one_m_prob + 1e-8)
    pos_cost = _ALPHA * (one_m_prob * one_m_prob) * -jnp.log(prob + 1e-8)
    # arithmetic blend; the (N,1) x (1,M_pad) broadcast happens implicitly once
    gt_mask = (gt_obj > 0.5).astype(jnp.float32)            # (1, M_pad)
    cls_cost = neg_cost + gt_mask * (pos_cost - neg_cost)   # (N, M_pad)

    cost_ref[...] = cls_cost * 0.5 + center_loss * 0.5


# ---------------------------------------------------------------------------
# Wrapper: all decoder layers in a single pallas_call (jitted -> compiled once)
# ---------------------------------------------------------------------------
@functools.partial(jax.jit, static_argnames=())
def compute_cost_matrices(pred_stack: jnp.ndarray, gt_trajs: jnp.ndarray) -> jnp.ndarray:
    """cost[L, B, N, M] = 0.5 * focal_cls_cost + 0.5 * (1 - exp(-L1_center_dist/30)).

    pred_stack: (L, B, N, C) stacked decoder outputs, gt_trajs: (B, M, C).
    """
    pred_stack = pred_stack.astype(jnp.float32)
    gt_trajs = gt_trajs.astype(jnp.float32)
    L, B, N, _ = pred_stack.shape
    _, M, _ = gt_trajs.shape

    n_pad = _round_up(N, 8)        # sublane alignment
    m_pad = _round_up(M, 128)      # lane-dense output -> unmasked vector stores

    # Slice out only the channels the cost needs: [X, Y, Z, HAS_OBJECT].
    def _slice_channels(x):
        return jnp.concatenate(
            [x[..., TRAJ_X:TRAJ_Z + 1],
             x[..., TRAJ_HAS_OBJECT:TRAJ_HAS_OBJECT + 1]],
            axis=-1,
        )

    pred_sl = _slice_channels(pred_stack)                       # (L, B, N, 4)
    if n_pad != N:
        pred_sl = jnp.pad(pred_sl, ((0, 0), (0, 0), (0, n_pad - N), (0, 0)))

    gt_sl = _slice_channels(gt_trajs)                           # (B, M, 4)
    gt_sl = jnp.transpose(gt_sl, (0, 2, 1))                     # (B, 4, M) channel-major
    if m_pad != M:
        gt_sl = jnp.pad(gt_sl, ((0, 0), (0, 0), (0, m_pad - M)))

    cost = pl.pallas_call(
        _cost_matrix_kernel,
        out_shape=jax.ShapeDtypeStruct((L, B, n_pad, m_pad), jnp.float32),
        grid=(L, B),
        in_specs=[
            pl.BlockSpec((None, None, n_pad, 4), lambda l, b: (l, b, 0, 0)),
            pl.BlockSpec((None, 4, m_pad), lambda l, b: (b, 0, 0)),
        ],
        out_specs=pl.BlockSpec((None, None, n_pad, m_pad),
                               lambda l, b: (l, b, 0, 0)),
        compiler_params=pltpu.CompilerParams(
            dimension_semantics=("parallel", "parallel")),
    )(pred_sl, gt_sl)

    return cost[:, :, :N, :M]


# ---------------------------------------------------------------------------
# Pure-JAX reference (mirrors the PyTorch math) for correctness checking
# ---------------------------------------------------------------------------
def _reference_cost(pred_stack: jnp.ndarray, gt_trajs: jnp.ndarray) -> jnp.ndarray:
    p = pred_stack[..., TRAJ_X:TRAJ_Z + 1]                       # (L,B,N,3)
    g = gt_trajs[..., TRAJ_X:TRAJ_Z + 1]                         # (B,M,3)
    dist = jnp.sum(jnp.abs(p[:, :, :, None, :] - g[None, :, None, :, :]), axis=-1)
    center = 1.0 - jnp.exp(-dist / 30.0)
    pred_obj = pred_stack[..., TRAJ_HAS_OBJECT][:, :, :, None]   # (L,B,N,1)
    gt_obj = gt_trajs[..., TRAJ_HAS_OBJECT][None, :, None, :]    # (1,B,1,M)
    alpha, gamma = 0.25, 2.0
    prob = jax.nn.sigmoid(pred_obj)
    neg = (1.0 - alpha) * prob ** gamma * -jnp.log(1.0 - prob + 1e-8)
    pos = alpha * (1.0 - prob) ** gamma * -jnp.log(prob + 1e-8)
    cls = jnp.where(gt_obj > 0.5, pos, neg)
    return 0.5 * cls + 0.5 * center


# ---------------------------------------------------------------------------
# Module-equivalent wrapper (forward semantics of Sparse4DLossWithDAC)
# ---------------------------------------------------------------------------
class Sparse4DLossWithDAC:
    def __init__(self, layer_loss_weights, **kwargs):
        self.obstacle_present_threshold = 0.5
        self.layer_loss_weights = layer_loss_weights
        self.matching_history = {}
        self._last_cost_matrices = None

    @staticmethod
    def _greedy_assignment(cost_np):
        # TODO(synk): scipy.optimize.linear_sum_assignment (Hungarian) has no
        # Pallas/TPU equivalent; a host-side greedy argmin fallback is used for
        # matching_history bookkeeping only (the returned loss in the reference
        # forward does not depend on the indices).
        c = np.array(cost_np, dtype=np.float64, copy=True)
        n, m = c.shape
        rows, cols = [], []
        for _ in range(min(n, m)):
            r, col = np.unravel_index(int(np.argmin(c)), c.shape)
            rows.append(int(r))
            cols.append(int(col))
            c[r, :] = np.inf
            c[:, col] = np.inf
        return tuple(rows), tuple(cols)

    def forward(self, gt_trajs, outputs, c_outputs=None):
        losses = {}
        # Fuse all decoder layers into ONE Pallas launch and ONE host sync.
        pred_stack = jnp.stack(outputs, axis=0)                   # (L, B, N, C)
        costs = compute_cost_matrices(pred_stack, gt_trajs)       # (L, B, N, M)
        self._last_cost_matrices = costs
        costs_np = jax.device_get(costs)
        num_layers, batch = costs_np.shape[0], costs_np.shape[1]

        for idx in range(num_layers):
            if idx not in self.matching_history:
                self.matching_history[idx] = []
            indices = [self._greedy_assignment(costs_np[idx, b]) for b in range(batch)]
            self.matching_history[idx].append(indices[0])
            for _ in indices:
                pass

        if c_outputs is not None:
            for idx, pred_trajs in enumerate(c_outputs[1:]):
                pass

        # Reference: losses dict is empty at this point -> sum([]) == 0
        losses["loss"] = sum(losses.values())
        return losses


# ---------------------------------------------------------------------------
# Demo
# ---------------------------------------------------------------------------
if __name__ == "__main__":
    key = jax.random.PRNGKey(0)
    B, N, M, C = 2, 16, 6, TRAJ_END_OF_INDEX
    n_layers = 3

    k_gt, k_lbl, *k_preds = jax.random.split(key, 2 + n_layers)

    gt_trajs = jax.random.normal(k_gt, (B, M, C), dtype=jnp.float32) * 5.0
    # HAS_OBJECT labels in {0, 1} for ground truth
    gt_labels = (jax.random.uniform(k_lbl, (B, M)) > 0.5).astype(jnp.float32)
    gt_trajs = gt_trajs.at[:, :, TRAJ_HAS_OBJECT].set(gt_labels)

    outputs = []
    for i in range(n_layers):
        k_pos, k_obj = jax.random.split(k_preds[i])
        traj = jax.random.normal(k_pos, (B, N, C), dtype=jnp.float32) * 5.0
        # predicted HAS_OBJECT logits in a moderate range
        obj_logits = jax.random.uniform(k_obj, (B, N), minval=-4.0, maxval=4.0)
        traj = traj.at[:, :, TRAJ_HAS_OBJECT].set(obj_logits)
        outputs.append(traj)

    # run the fused Pallas kernel once and block on it
    pred_stack = jnp.stack(outputs, axis=0)                       # (L, B, N, C)
    cost = compute_cost_matrices(pred_stack, gt_trajs)
    cost = jax.block_until_ready(cost)
    assert cost.shape == (n_layers, B, N, M)

    # correctness check against a pure-JAX reference of the PyTorch math
    ref = jax.block_until_ready(_reference_cost(pred_stack, gt_trajs))
    np.testing.assert_allclose(np.asarray(cost), np.asarray(ref),
                               rtol=1e-4, atol=1e-4)

    # full forward-pass semantics (jit cache -> no recompilation here)
    loss_module = Sparse4DLossWithDAC(layer_loss_weights=[1.0] * n_layers)
    losses = loss_module.forward(gt_trajs, outputs, c_outputs=None)
    jax.block_until_ready(loss_module._last_cost_matrices)
    assert losses["loss"] == 0  # matches reference: sum of empty losses dict
    assert len(loss_module.matching_history) == n_layers

    print("KERNEL_OK")
</pallas_src>

<mosaic_0001>
module attributes {stable_mosaic.version = 11 : i64} {
  func.func @_cost_matrix_kernel(%arg0: i32, %arg1: i32, %arg2: memref<1x1x16x4xf32, #tpu.memory_space<vmem>>, %arg3: memref<1x4x128xf32, #tpu.memory_space<vmem>>, %arg4: memref<1x1x16x128xf32, #tpu.memory_space<vmem>>) attributes {dimension_semantics = [#tpu.dimension_semantics<parallel>, #tpu.dimension_semantics<parallel>], iteration_bounds = array<i64: 3, 2>, scalar_prefetch = 0 : i64, scratch_operands = 0 : i64, tpu.core_type = #tpu.core_type<tc>, window_params = [{transform_indices = @transform_0, window_bounds = array<i64: 1, 1, 16, 4>}, {transform_indices = @transform_1, window_bounds = array<i64: 1, 4, 128>}, {transform_indices = @transform_2, window_bounds = array<i64: 1, 1, 16, 128>}]} {
    %c0 = arith.constant 0 : index
    %c0_0 = arith.constant 0 : index
    %c0_1 = arith.constant 0 : index
    %c0_2 = arith.constant 0 : index
    %0 = vector.load %arg2[%c0, %c0_0, %c0_1, %c0_2] : memref<1x1x16x4xf32, #tpu.memory_space<vmem>>, vector<1x1x16x1xf32>
    %1 = vector.shape_cast %0 : vector<1x1x16x1xf32> to vector<16x1xf32>
    %c0_3 = arith.constant 0 : index
    %c0_4 = arith.constant 0 : index
    %c0_5 = arith.constant 0 : index
    %2 = vector.load %arg3[%c0_3, %c0_4, %c0_5] : memref<1x4x128xf32, #tpu.memory_space<vmem>>, vector<1x1x128xf32>
    %3 = vector.shape_cast %2 : vector<1x1x128xf32> to vector<1x128xf32>
    %4 = vector.broadcast %1 : vector<16x1xf32> to vector<16x128xf32>
    %5 = vector.broadcast %3 : vector<1x128xf32> to vector<16x128xf32>
    %6 = arith.subf %4, %5 : vector<16x128xf32>
    %7 = math.absf %6 : vector<16x128xf32>
    %c0_6 = arith.constant 0 : index
    %c0_7 = arith.constant 0 : index
    %c0_8 = arith.constant 0 : index
    %c1 = arith.constant 1 : index
    %8 = vector.load %arg2[%c0_6, %c0_7, %c0_8, %c1] : memref<1x1x16x4xf32, #tpu.memory_space<vmem>>, vector<1x1x16x1xf32>
    %9 = vector.shape_cast %8 : vector<1x1x16x1xf32> to vector<16x1xf32>
    %c0_9 = arith.constant 0 : index
    %c1_10 = arith.constant 1 : index
    %c0_11 = arith.constant 0 : index
    %10 = vector.load %arg3[%c0_9, %c1_10, %c0_11] : memref<1x4x128xf32, #tpu.memory_space<vmem>>, vector<1x1x128xf32>
    %11 = vector.shape_cast %10 : vector<1x1x128xf32> to vector<1x128xf32>
    %12 = vector.broadcast %9 : vector<16x1xf32> to vector<16x128xf32>
    %13 = vector.broadcast %11 : vector<1x128xf32> to vector<16x128xf32>
    %14 = arith.subf %12, %13 : vector<16x128xf32>
    %15 = math.absf %14 : vector<16x128xf32>
    %16 = arith.addf %7, %15 : vector<16x128xf32>
    %c0_12 = arith.constant 0 : index
    %c0_13 = arith.constant 0 : index
    %c0_14 = arith.constant 0 : index
    %c2 = arith.constant 2 : index
    %17 = vector.load %arg2[%c0_12, %c0_13, %c0_14, %c2] : memref<1x1x16x4xf32, #tpu.memory_space<vmem>>, vector<1x1x16x1xf32>
    %18 = vector.shape_cast %17 : vector<1x1x16x1xf32> to vector<16x1xf32>
    %c0_15 = arith.constant 0 : index
    %c2_16 = arith.constant 2 : index
    %c0_17 = arith.constant 0 : index
    %19 = vector.load %arg3[%c0_15, %c2_16, %c0_17] : memref<1x4x128xf32, #tpu.memory_space<vmem>>, vector<1x1x128xf32>
    %20 = vector.shape_cast %19 : vector<1x1x128xf32> to vector<1x128xf32>
    %21 = vector.broadcast %18 : vector<16x1xf32> to vector<16x128xf32>
    %22 = vector.broadcast %20 : vector<1x128xf32> to vector<16x128xf32>
    %23 = arith.subf %21, %22 : vector<16x128xf32>
    %24 = math.absf %23 : vector<16x128xf32>
    %25 = arith.addf %16, %24 : vector<16x128xf32>
    %cst = arith.constant 0.000000e+00 : f32
    %26 = vector.broadcast %cst : f32 to vector<16x128xf32>
    %27 = arith.subf %26, %25 : vector<16x128xf32>
    %cst_18 = arith.constant 0.0333333351 : f32
    %28 = vector.broadcast %cst_18 : f32 to vector<16x128xf32>
    %29 = arith.mulf %27, %28 : vector<16x128xf32>
    %30 = math.exp %29 : vector<16x128xf32>
    %cst_19 = arith.constant 1.000000e+00 : f32
    %31 = vector.broadcast %cst_19 : f32 to vector<16x128xf32>
    %32 = arith.subf %31, %30 : vector<16x128xf32>
    %c0_20 = arith.constant 0 : index
    %c0_21 = arith.constant 0 : index
    %c0_22 = arith.constant 0 : index
    %c3 = arith.constant 3 : index
    %33 = vector.load %arg2[%c0_20, %c0_21, %c0_22, %c3] : memref<1x1x16x4xf32, #tpu.memory_space<vmem>>, vector<1x1x16x1xf32>
    %34 = vector.shape_cast %33 : vector<1x1x16x1xf32> to vector<16x1xf32>
    %c0_23 = arith.constant 0 : index
    %c3_24 = arith.constant 3 : index
    %c0_25 = arith.constant 0 : index
    %35 = vector.load %arg3[%c0_23, %c3_24, %c0_25] : memref<1x4x128xf32, #tpu.memory_space<vmem>>, vector<1x1x128xf32>
    %36 = vector.shape_cast %35 : vector<1x1x128xf32> to vector<1x128xf32>
    %37 = arith.negf %34 : vector<16x1xf32>
    %38 = math.exp %37 : vector<16x1xf32>
    %cst_26 = arith.constant 1.000000e+00 : f32
    %39 = vector.broadcast %cst_26 : f32 to vector<16x1xf32>
    %40 = arith.addf %39, %38 : vector<16x1xf32>
    %41 = arith.divf %39, %40 : vector<16x1xf32>
    %cst_27 = arith.constant 1.000000e+00 : f32
    %42 = vector.broadcast %cst_27 : f32 to vector<16x1xf32>
    %43 = arith.subf %42, %41 : vector<16x1xf32>
    %44 = arith.mulf %41, %41 : vector<16x1xf32>
    %cst_28 = arith.constant 7.500000e-01 : f32
    %45 = vector.broadcast %cst_28 : f32 to vector<16x1xf32>
    %46 = arith.mulf %45, %44 : vector<16x1xf32>
    %cst_29 = arith.constant 9.99999993E-9 : f32
    %47 = vector.broadcast %cst_29 : f32 to vector<16x1xf32>
    %48 = arith.addf %43, %47 : vector<16x1xf32>
    %49 = math.log %48 : vector<16x1xf32>
    %cst_30 = arith.constant 0.000000e+00 : f32
    %50 = vector.broadcast %cst_30 : f32 to vector<16x1xf32>
    %51 = arith.subf %50, %49 : vector<16x1xf32>
    %52 = arith.mulf %46, %51 : vector<16x1xf32>
    %53 = arith.mulf %43, %43 : vector<16x1xf32>
    %cst_31 = arith.constant 2.500000e-01 : f32
    %54 = vector.broadcast %cst_31 : f32 to vector<16x1xf32>
    %55 = arith.mulf %54, %53 : vector<16x1xf32>
    %cst_32 = arith.constant 9.99999993E-9 : f32
    %56 = vector.broadcast %cst_32 : f32 to vector<16x1xf32>
    %57 = arith.addf %41, %56 : vector<16x1xf32>
    %58 = math.log %57 : vector<16x1xf32>
    %cst_33 = arith.constant 0.000000e+00 : f32
    %59 = vector.broadcast %cst_33 : f32 to vector<16x1xf32>
    %60 = arith.subf %59, %58 : vector<16x1xf32>
    %61 = arith.mulf %55, %60 : vector<16x1xf32>
    %cst_34 = arith.constant 5.000000e-01 : f32
    %62 = vector.broadcast %cst_34 : f32 to vector<1x128xf32>
    %63 = arith.cmpf ogt, %36, %62 : vector<1x128xf32>
    %64 = arith.extui %63 : vector<1x128xi1> to vector<1x128xi32>
    %65 = arith.sitofp %64 : vector<1x128xi32> to vector<1x128xf32>
    %66 = arith.subf %61, %52 : vector<16x1xf32>
    %67 = vector.broadcast %65 : vector<1x128xf32> to vector<16x128xf32>
    %68 = vector.broadcast %66 : vector<16x1xf32> to vector<16x128xf32>
    %69 = arith.mulf %67, %68 : vector<16x128xf32>
    %70 = vector.broadcast %52 : vector<16x1xf32> to vector<16x128xf32>
    %71 = arith.addf %70, %69 : vector<16x128xf32>
    %cst_35 = arith.constant 5.000000e-01 : f32
    %72 = vector.broadcast %cst_35 : f32 to vector<16x128xf32>
    %73 = arith.mulf %71, %72 : vector<16x128xf32>
    %cst_36 = arith.constant 5.000000e-01 : f32
    %74 = vector.broadcast %cst_36 : f32 to vector<16x128xf32>
    %75 = arith.mulf %32, %74 : vector<16x128xf32>
    %76 = arith.addf %73, %75 : vector<16x128xf32>
    %c0_37 = arith.constant 0 : index
    %c0_38 = arith.constant 0 : index
    %c0_39 = arith.constant 0 : index
    %c0_40 = arith.constant 0 : index
    %77 = vector.load %arg4[%c0_37, %c0_38, %c0_39, %c0_40] : memref<1x1x16x128xf32, #tpu.memory_space<vmem>>, vector<1x1x16x128xf32>
    %78 = vector.shape_cast %77 : vector<1x1x16x128xf32> to vector<16x128xf32>
    %79 = vector.shape_cast %76 : vector<16x128xf32> to vector<1x1x16x128xf32>
    tpu.vector_store %arg4[%c0_37, %c0_38, %c0_39, %c0_40], %79 {strides = array<i32>} : memref<1x1x16x128xf32, #tpu.memory_space<vmem>>, vector<1x1x16x128xf32>,
    return
  }
  func.func @transform_0(%arg0: i32, %arg1: i32) -> (i32, i32, i32, i32) {
    %c0_i32 = arith.constant 0 : i32
    %c0_i32_0 = arith.constant 0 : i32
    %c0_i32_1 = arith.constant 0 : i32
    return %arg0, %arg1, %c0_i32, %c0_i32_0 : i32, i32, i32, i32
  }
  func.func @transform_1(%arg0: i32, %arg1: i32) -> (i32, i32, i32) {
    %c0_i32 = arith.constant 0 : i32
    %c0_i32_0 = arith.constant 0 : i32
    %c0_i32_1 = arith.constant 0 : i32
    return %arg1, %c0_i32, %c0_i32_0 : i32, i32, i32
  }
  func.func @transform_2(%arg0: i32, %arg1: i32) -> (i32, i32, i32, i32) {
    %c0_i32 = arith.constant 0 : i32
    %c0_i32_0 = arith.constant 0 : i32
    %c0_i32_1 = arith.constant 0 : i32
    return %arg0, %arg1, %c0_i32, %c0_i32_0 : i32, i32, i32, i32
  }
}

</mosaic_0001>

<llo_original>
// kernel: compute_cost_matrices.1
$region0: #{compute_cost_matrices.1}
  #allocation0 [shape = 'u32[]', space=smem, size = 0x4, offset = 0x4, fixed_abs, tag = 'smem constant byte address 0x4 - core index']
  #allocation1 [shape = 'u32[144,128]{1,0:T(1,128)}', space=vmem, size = 0x12000, scoped, tag = 'internal scratch']
  %s0 = inlined_call_operand.vmem [shape: f32[3,2,16,4], index: 0, kind: input, shape index: {}]
  %s1 = inlined_call_operand.vmem [shape: f32[2,4,128], index: 1, kind: input, shape index: {}]
  %s2 = inlined_call_operand.vmem [shape: f32[3,2,16,128], index: 2, kind: output, shape index: {}]
  %s3 = sld [smem:[#allocation0]]
  $region41: #{compute_cost_matrices.1} parent=0
    _
  %s5 = ssub.s32 1, %s3
  %s6 = scalar_select 0, %s5, %s3
  loop: start=0, step=1, limit=8
  $region2: #{compute_cost_matrices.1} parent=0 // loop_pre_header
    _
  $region3: #{compute_cost_matrices.1} parent=0 // loop_header
    %s8 = sphi 0, %s12
    %p9 = scmp.ge.s32.totalorder %s8, 8
    %s15 = sphi 0, %s27
    %s16 = sphi 0, %s23
    %s17 = sphi 0, %s15
    %s18 = sphi 0, %s16
    %s19 = sphi 0, %s17
    %s20 = sphi 0, %s18
    %s32 = sphi 0, %s34
    %s35 = sphi 0, %s32
    %s36 = sphi 0, %s35
    %s52 = sphi 0, %s36
    %s58 = sphi 0, %s60
    %s61 = sphi 0, %s58
    %s62 = sphi 0, %s61
    %s78 = sphi 0, %s62
    %s86 = sphi 0, %s88
    %s89 = sphi 0, %s86
    %s90 = sphi 0, %s89
    %s106 = sphi 0, %s90
  $region4: #{compute_cost_matrices.1} parent=0 // loop_header_branch
    %11 = sbr.rel (%p9) target = $region8
  $region5: #{compute_cost_matrices.1} parent=0 // loop_body
    %s13 = ssub.s32 %s8, 1
    %s14 = ssub.s32 %s8, 2
    %s21 = sadd.s32 1, %s16
    %p22 = scmp.ge.s32.totalorder %s21, 2
    %s23 = scalar_select %p22, 0, %s21
    %s24 = sadd.s32 1, %s15
    %s25 = scalar_select %p22, %s24, %s15
    %p26 = scmp.ge.s32.totalorder %s25, 3
    %s27 = scalar_select %p26, 0, %s25
    %s28 = ssub.s32 %s15, %s27
    %s29 = ssub.s32 %s16, %s23
    %s30 = sor.u32 %s28, %s29
    %p31 = scmp.eq.s32.totalorder %s30, 0
    %s33 = sadd.s32 %s32, 1
    %s34 = scalar_select %p31, %s32, %s33
    %p37 = pneg %p31
    %p38 = scmp.eq.s32.totalorder %s8, 5
    %p39 = por %p37, %p38
    %p40 = scmp.ne.s32.totalorder %s32, %s35
    %p41 = scmp.eq.s32.totalorder %s8, 0
    %p42 = por %p40, %p41
    %p43 = scmp.ne.s32.totalorder %s32, %s35
    %p44 = scmp.eq.s32.totalorder %s13, 5
    %p45 = por %p43, %p44
    %p46 = scmp.ne.s32.totalorder %s35, %s36
    %p47 = scmp.eq.s32.totalorder %s13, 0
    %p48 = por %p46, %p47
    %p49 = scmp.ne.s32.totalorder %s35, %s36
    %p50 = scmp.eq.s32.totalorder %s14, 5
    %p51 = por %p49, %p50
    %p53 = scmp.ne.s32.totalorder %s36, %s52
    %p54 = scmp.eq.s32.totalorder %s14, 0
    %p55 = por %p53, %p54
    %s56 = ssub.s32 %s16, %s23
    %p57 = scmp.eq.s32.totalorder %s56, 0
    %s59 = sadd.s32 %s58, 1
    %s60 = scalar_select %p57, %s58, %s59
    %p63 = pneg %p57
    %p64 = scmp.eq.s32.totalorder %s8, 5
    %p65 = por %p63, %p64
    %p66 = scmp.ne.s32.totalorder %s58, %s61
    %p67 = scmp.eq.s32.totalorder %s8, 0
    %p68 = por %p66, %p67
    %p69 = scmp.ne.s32.totalorder %s58, %s61
    %p70 = scmp.eq.s32.totalorder %s13, 5
    %p71 = por %p69, %p70
    %p72 = scmp.ne.s32.totalorder %s61, %s62
    %p73 = scmp.eq.s32.totalorder %s13, 0
    %p74 = por %p72, %p73
    %p75 = scmp.ne.s32.totalorder %s61, %s62
    %p76 = scmp.eq.s32.totalorder %s14, 5
    %p77 = por %p75, %p76
    %p79 = scmp.ne.s32.totalorder %s62, %s78
    %p80 = scmp.eq.s32.totalorder %s14, 0
    %p81 = por %p79, %p80
    %s82 = ssub.s32 %s15, %s27
    %s83 = ssub.s32 %s16, %s23
    %s84 = sor.u32 %s82, %s83
    %p85 = scmp.eq.s32.totalorder %s84, 0
    %s87 = sadd.s32 %s86, 1
    %s88 = scalar_select %p85, %s86, %s87
    %p91 = pneg %p85
    %p92 = scmp.eq.s32.totalorder %s8, 5
    %p93 = por %p91, %p92
    %p94 = scmp.ne.s32.totalorder %s86, %s89
    %p95 = scmp.eq.s32.totalorder %s8, 0
    %p96 = por %p94, %p95
    %p97 = scmp.ne.s32.totalorder %s86, %s89
    %p98 = scmp.eq.s32.totalorder %s13, 5
    %p99 = por %p97, %p98
    %p100 = scmp.ne.s32.totalorder %s89, %s90
    %p101 = scmp.eq.s32.totalorder %s13, 0
    %p102 = por %p100, %p101
    %p103 = scmp.ne.s32.totalorder %s89, %s90
    %p104 = scmp.eq.s32.totalorder %s14, 5
    %p105 = por %p103, %p104
    %p107 = scmp.ne.s32.totalorder %s90, %s106
    %p108 = scmp.eq.s32.totalorder %s14, 0
    %p109 = por %p107, %p108
    %p110 = scmp.le.s32.totalorder 1, %s8
    %p111 = scmp.lt.s32.totalorder %s8, 7
    %p112 = pnand %p110, %p111
    %p113 = pneg %p112
    // Predicated region
    $region9: #{compute_cost_matrices.1} parent=5 // pred_check
      _
    $region10: #{compute_cost_matrices.1} parent=5 // pred_check_branch
      %115 = sbr.rel (%p112) target = $region12
    $region11: #{compute_cost_matrices.1} parent=5 // pred_region
      %s116 = ssub.s32 %s8, 1
    $region12: #{compute_cost_matrices.1} parent=5 // pred_fallthru
      _
    %p117 = scmp.lt.s32.totalorder %s8, 6
    // Predicated region
    $region13: #{compute_cost_matrices.1} parent=5 // pred_check
      %p118 = pneg %p117
    $region14: #{compute_cost_matrices.1} parent=5 // pred_check_branch
      %120 = sbr.rel (%p118) target = $region16
    $region15: #{compute_cost_matrices.1} parent=5 // pred_region
      // Predicated region
      $region17: #{compute_cost_matrices.1} parent=15 // pred_check
        %p121 = pneg %p42
      $region18: #{compute_cost_matrices.1} parent=15 // pred_check_branch
        %123 = sbr.rel (%p121) target = $region20
      $region19: #{compute_cost_matrices.1} parent=15 // pred_region
        %p124 = scmp.lt.s32.totalorder %s15, 2
        %s125 = scalar_select %p124, %s15, 2
        %p126 = scmp.lt.s32.totalorder %s16, 1
        %s127 = scalar_select %p126, %s16, 1
        %s128 = smul.addr %s127, 2
        %s129 = smul.addr %s125, 4
        %s130 = sadd.s32 %s128, %s129
        %s131 = smul.addr %s130, 8
        %s132 = scalar_lea.vmem %s0, %s131
      $region20: #{compute_cost_matrices.1} parent=15 // pred_fallthru
        _
      // Predicated region
      $region21: #{compute_cost_matrices.1} parent=15 // pred_check
        %p133 = pneg %p68
      $region22: #{compute_cost_matrices.1} parent=15 // pred_check_branch
        %135 = sbr.rel (%p133) target = $region24
      $region23: #{compute_cost_matrices.1} parent=15 // pred_region
        %p136 = scmp.lt.s32.totalorder %s16, 1
        %s137 = scalar_select %p136, %s16, 1
        %s138 = smul.addr %s137, 4
        %s139 = scalar_lea.vmem %s1, %s138
      $region24: #{compute_cost_matrices.1} parent=15 // pred_fallthru
        _
    $region16: #{compute_cost_matrices.1} parent=5 // pred_fallthru
      _
    %p140 = scmp.le.s32.totalorder 1, %s8
    %p141 = scmp.lt.s32.totalorder %s8, 7
    %p142 = pnand %p140, %p141
    %p143 = pneg %p142
    // Predicated region
    $region25: #{compute_cost_matrices.1} parent=5 // pred_check
      _
    $region26: #{compute_cost_matrices.1} parent=5 // pred_check_branch
      %145 = sbr.rel (%p142) target = $region28
    $region27: #{compute_cost_matrices.1} parent=5 // pred_region
      %s146 = ssub.s32 %s8, 1
      %p147 = scmp.lt.s32.totalorder %s17, 2
      %s148 = scalar_select %p147, %s17, 2
      %p149 = scmp.lt.s32.totalorder %s18, 1
      %s150 = scalar_select %p149, %s18, 1
      %s151 = smul.addr %s150, 2
      %s152 = smul.addr %s148, 4
      %s153 = sadd.s32 %s151, %s152
      %s154 = smul.addr %s153, 8
      %s155 = scalar_lea.vmem %s0, %s154
      %p156 = pneg %p48
      %p157 = pneg %p45
      %p158 = scmp.lt.s32.totalorder %s18, 1
      %s159 = scalar_select %p158, %s18, 1
      %s160 = smul.addr %s159, 4
      %s161 = scalar_lea.vmem %s1, %s160
      %p162 = pneg %p74
      %p163 = pneg %p71
      %p164 = pneg %p102
      %p165 = pneg %p99
      %p166 = scmp.lt.s32.totalorder %s17, 2
      %s167 = scalar_select %p166, %s17, 2
      %p168 = scmp.lt.s32.totalorder %s18, 1
      %s169 = scalar_select %p168, %s18, 1
      %s170 = smul.addr %s169, 2
      %s171 = smul.addr %s167, 4
      %s172 = sadd.s32 %s170, %s171
      %s173 = smul.addr %s172, 8
      %s174 = scalar_lea.vmem %s2, %s173
      %p175 = scmp.lt.s32.totalorder %s17, 2
      %s176 = scalar_select %p175, %s17, 2
      %p177 = scmp.lt.s32.totalorder %s18, 1
      %s178 = scalar_select %p177, %s18, 1
      %s179 = smul.addr %s178, 2
      %s180 = smul.addr %s176, 4
      %s181 = sadd.s32 %s179, %s180
      %s182 = smul.addr %s181, 8
      %s183 = scalar_lea.vmem %s0, %s182
      %p184 = scmp.lt.s32.totalorder %s18, 1
      %s185 = scalar_select %p184, %s18, 1
      %s186 = smul.addr %s185, 4
      %s187 = scalar_lea.vmem %s1, %s186
      %p188 = scmp.lt.s32.totalorder %s17, 2
      %s189 = scalar_select %p188, %s17, 2
      %p190 = scmp.lt.s32.totalorder %s18, 1
      %s191 = scalar_select %p190, %s18, 1
      %s192 = smul.addr %s191, 2
      %s193 = smul.addr %s189, 4
      %s194 = sadd.s32 %s192, %s193
      %s195 = smul.addr %s194, 8
      %s196 = scalar_lea.vmem %s2, %s195
      %v197 = vld [vmem:[%s183] sm:$0xff]
      %v198 = vld [vmem:[%s183 + $0x8] sm:$0xff]
      %v199 = vld [vmem:[%s187] sm:$0x1]
      %201 = vset.pattern.permute.xlu0 0
      %202 = vperm.xlu0 %201, %v197
      %v203 = vpop.permute.xlu0 %202
      %206 = vset.pattern.permute.xlu0 0
      %207 = vperm.xlu0 %206, %v198
      %v208 = vpop.permute.xlu0 %207
      %v210 = vlaneseq
      %v211 = vshrl.u32 %v210, 7
      %v212 = vsub.s32 0, %v211
      %v213 = vrot.slane %v199, %v212
      %v214 = vsub.f32 %v203, %v213
      %v215 = vsub.f32 %v208, %v213
      %v216 = vand.u32 2147483647, %v214
      %v217 = vand.u32 2147483647, %v215
      %v218 = vld [vmem:[%s187 + $0x1] sm:$0x1]
      %219 = vset.pattern.permute.xlu0 1
      %220 = vperm.xlu0 %219, %v197
      %v221 = vpop.permute.xlu0 %220
      %223 = vset.pattern.permute.xlu0 1
      %224 = vperm.xlu0 %223, %v198
      %v225 = vpop.permute.xlu0 %224
      %v227 = vlaneseq
      %v228 = vshrl.u32 %v227, 7
      %v229 = vsub.s32 0, %v228
      %v230 = vrot.slane %v218, %v229
      %v231 = vsub.f32 %v221, %v230
      %v232 = vsub.f32 %v225, %v230
      %v233 = vand.u32 2147483647, %v231
      %v234 = vand.u32 2147483647, %v232
      %v235 = vadd.f32 %v216, %v233
      %v236 = vadd.f32 %v217, %v234
      %v237 = vld [vmem:[%s187 + $0x2] sm:$0x1]
      %238 = vset.pattern.permute.xlu0 2
      %239 = vperm.xlu0 %238, %v197
      %v240 = vpop.permute.xlu0 %239
      %242 = vset.pattern.permute.xlu0 2
      %243 = vperm.xlu0 %242, %v198
      %v244 = vpop.permute.xlu0 %243
      %v246 = vlaneseq
      %v247 = vshrl.u32 %v246, 7
      %v248 = vsub.s32 0, %v247
      %v249 = vrot.slane %v237, %v248
      %v250 = vsub.f32 %v240, %v249
      %v251 = vsub.f32 %v244, %v249
      %v252 = vand.u32 2147483647, %v250
      %v253 = vand.u32 2147483647, %v251
      %v254 = vadd.f32 %v235, %v252
      %v255 = vadd.f32 %v236, %v253
      %v256 = vsub.f32 0.0, %v254
      %v257 = vsub.f32 0.0, %v255
      %v258 = vmul.f32 %v256, 0.033333335
      %v259 = vmul.f32 %v257, 0.033333335
      %v260 = vmul.f32 %v258, 1.442695
      %v261 = vpow.pop %v260
      %v262 = vmul.f32 %v259, 1.442695
      %v263 = vpow.pop %v262
      %v264 = vsub.f32 1.0, %v261
      %v265 = vsub.f32 1.0, %v263
      %v266 = vld [vmem:[%s187 + $0x3] sm:$0x1]
      %v267 = vxor.u32 %v197, 2147483648
      %v268 = vxor.u32 %v198, 2147483648
      %v269 = vmul.f32 %v267, 1.442695
      %v270 = vpow.pop %v269
      %v271 = vmul.f32 %v268, 1.442695
      %v272 = vpow.pop %v271
      %v273 = vadd.f32 %v270, 1.0
      %v274 = vadd.f32 %v272, 1.0
      %v275 = vrcp.pop %v273
      %v276 = vmul.f32 1.0, %v275
      %v277 = vrcp.pop %v274
      %v278 = vmul.f32 1.0, %v277
      %v279 = vsub.f32 1.0, %v276
      %v280 = vsub.f32 1.0, %v278
      %v281 = vmul.f32 %v276, %v276
      %v282 = vmul.f32 %v278, %v278
      %v283 = vmul.f32 %v281, 0.75
      %v284 = vmul.f32 %v282, 0.75
      %v285 = vadd.f32 %v279, 1e-08
      %v286 = vadd.f32 %v280, 1e-08
      %v287 = vlog2.pop %v285
      %v288 = vmul.f32 %v287, 0.6931472
      %v289 = vlog2.pop %v286
      %v290 = vmul.f32 %v289, 0.6931472
      %v291 = vsub.f32 0.0, %v288
      %v292 = vsub.f32 0.0, %v290
      %v293 = vmul.f32 %v283, %v291
      %v294 = vmul.f32 %v284, %v292
      %v295 = vmul.f32 %v279, %v279
      %v296 = vmul.f32 %v280, %v280
      %v297 = vmul.f32 %v295, 0.25
      %v298 = vmul.f32 %v296, 0.25
      %v299 = vadd.f32 %v276, 1e-08
      %v300 = vadd.f32 %v278, 1e-08
      %v301 = vlog2.pop %v299
      %v302 = vmul.f32 %v301, 0.6931472
      %v303 = vlog2.pop %v300
      %v304 = vmul.f32 %v303, 0.6931472
      %v305 = vsub.f32 0.0, %v302
      %v306 = vsub.f32 0.0, %v304
      %v307 = vmul.f32 %v297, %v305
      %v308 = vmul.f32 %v298, %v306
      %vm309 = vcmp.gt.f32.partialorder %v266, 0.5
      %v310 = vsel %vm309, 1, 0
      %v311 = vcvt.s32.f32 %v310
      %v312 = vsub.f32 %v307, %v293
      %v313 = vsub.f32 %v308, %v294
      %v314 = vlaneseq
      %v315 = vshrl.u32 %v314, 7
      %v316 = vsub.s32 0, %v315
      %v317 = vrot.slane %v311, %v316
      %319 = vset.pattern.permute.xlu0 3
      %320 = vperm.xlu0 %319, %v312
      %v321 = vpop.permute.xlu0 %320
      %324 = vset.pattern.permute.xlu0 3
      %325 = vperm.xlu0 %324, %v313
      %v326 = vpop.permute.xlu0 %325
      %v328 = vmul.f32 %v317, %v321
      %v329 = vmul.f32 %v317, %v326
      %331 = vset.pattern.permute.xlu0 3
      %332 = vperm.xlu0 %331, %v293
      %v333 = vpop.permute.xlu0 %332
      %336 = vset.pattern.permute.xlu0 3
      %337 = vperm.xlu0 %336, %v294
      %v338 = vpop.permute.xlu0 %337
      %v340 = vadd.f32 %v333, %v328
      %v341 = vadd.f32 %v338, %v329
      %v342 = vmul.f32 %v340, 0.5
      %v343 = vmul.f32 %v341, 0.5
      %v344 = vmul.f32 %v264, 0.5
      %v345 = vmul.f32 %v265, 0.5
      %v346 = vadd.f32 %v342, %v344
      %v347 = vadd.f32 %v343, %v345
      %348 = vst [vmem:[%s196] sm:$0xff] %v346
      %349 = vst [vmem:[%s196 + $0x8] sm:$0xff] %v347
      %p350 = scmp.lt.s32.totalorder %s17, 2
      %s351 = scalar_select %p350, %s17, 2
      %p352 = scmp.lt.s32.totalorder %s18, 1
      %s353 = scalar_select %p352, %s18, 1
      %s354 = smul.addr %s353, 2
      %s355 = smul.addr %s351, 4
      %s356 = sadd.s32 %s354, %s355
      %s357 = smul.addr %s356, 8
      %s358 = scalar_lea.vmem %s2, %s357
      // Predicated region
      $region29: #{compute_cost_matrices.1} parent=27 // pred_check
        %p359 = pneg %p99
      $region30: #{compute_cost_matrices.1} parent=27 // pred_check_branch
        %361 = sbr.rel (%p359) target = $region32
      $region31: #{compute_cost_matrices.1} parent=27 // pred_region
        _
      $region32: #{compute_cost_matrices.1} parent=27 // pred_fallthru
        _
    $region28: #{compute_cost_matrices.1} parent=5 // pred_fallthru
      _
    %p362 = scmp.le.s32.totalorder 2, %s8
    // Predicated region
    $region33: #{compute_cost_matrices.1} parent=5 // pred_check
      %p363 = pneg %p362
    $region34: #{compute_cost_matrices.1} parent=5 // pred_check_branch
      %365 = sbr.rel (%p363) target = $region36
    $region35: #{compute_cost_matrices.1} parent=5 // pred_region
      %s366 = ssub.s32 %s8, 2
      // Predicated region
      $region37: #{compute_cost_matrices.1} parent=35 // pred_check
        %p367 = pneg %p105
      $region38: #{compute_cost_matrices.1} parent=35 // pred_check_branch
        %369 = sbr.rel (%p367) target = $region40
      $region39: #{compute_cost_matrices.1} parent=35 // pred_region
        %p370 = scmp.lt.s32.totalorder %s19, 2
        %s371 = scalar_select %p370, %s19, 2
        %p372 = scmp.lt.s32.totalorder %s20, 1
        %s373 = scalar_select %p372, %s20, 1
        %s374 = smul.addr %s373, 2
        %s375 = smul.addr %s371, 4
        %s376 = sadd.s32 %s374, %s375
        %s377 = smul.addr %s376, 8
        %s378 = scalar_lea.vmem %s2, %s377
      $region40: #{compute_cost_matrices.1} parent=35 // pred_fallthru
        _
    $region36: #{compute_cost_matrices.1} parent=5 // pred_fallthru
      _
  $region6: #{compute_cost_matrices.1} parent=0 // loop_footer
    %s12 = sadd.s32 1, %s8
  $region7: #{compute_cost_matrices.1} parent=0 // loop_footer_branch
    %7 = sbr.rel target = $region3
  $region8: #{compute_cost_matrices.1} parent=0 // loop_exit
    _

</llo_original>
